<compile_context>
chip_gen: v7x
topology: tpu7x:2x2x1
jax: 0.10.0
libtpu: 0.0.40
codegen_flags: <defaults>
</compile_context>

<pallas_src>
import jax
import jax.numpy as jnp
from jax.experimental import pallas as pl
from jax.experimental.pallas import tpu as pltpu

IMAGE_SIZE = 784
HIDDEN_SIZE = 256
K_PAD = 896      # 784 rounded up to a multiple of 128
OUT_PAD = 128    # lane-dense output width (real output is column 0)


def _disc_kernel(x_ref, w1_ref, b1_ref, w2_ref, b2_ref, o_ref):
    # First linear layer: (tm, 896) bf16 @ (896, 256) bf16 -> f32 on the MXU.
    h = jnp.dot(x_ref[...], w1_ref[...], preferred_element_type=jnp.float32)
    h = h + b1_ref[...]                      # (tm, 256) + (1, 256) broadcast
    # LeakyReLU(0.2)
    h = jnp.where(h > 0, h, 0.2 * h)
    # Second linear layer: (tm, 256) bf16 @ (256, 128) bf16 -> f32.
    logits = jnp.dot(h.astype(w2_ref.dtype), w2_ref[...],
                     preferred_element_type=jnp.float32)
    logits = logits + b2_ref[...]            # (tm, 128) + (1, 128) broadcast
    # Sigmoid: exp on EUP, approximate reciprocal on EUP (keeps VALU free).
    o_ref[...] = pl.reciprocal(1.0 + jnp.exp(-logits),
                               approx=True).astype(o_ref.dtype)


def discriminator_forward(x, w1, b1, w2, b2, *, tm=None):
    """x: (N, 784) f32; w1: (784, 256); b1: (256,); w2: (256, 1); b2: (1,).

    Weights are stored [in, out]; the kernel computes x @ W + b, which matches
    PyTorch's x @ W.T + b with W = [out, in].
    """
    n = x.shape[0]

    # Batch tile: large for real batches (>= 2 grid steps once n >= 1024 so
    # both v7x TensorCores stay busy), single tile for small batches.
    if tm is None:
        tm = 512 if n >= 512 else max(8, pl.cdiv(n, 8) * 8)
    n_pad = pl.cdiv(n, tm) * tm

    # bf16 inputs / weights, zero-padded to aligned shapes.
    xp = jnp.zeros((n_pad, K_PAD), jnp.bfloat16)
    xp = xp.at[:n, :IMAGE_SIZE].set(x.astype(jnp.bfloat16))
    w1p = jnp.zeros((K_PAD, HIDDEN_SIZE), jnp.bfloat16)
    w1p = w1p.at[:IMAGE_SIZE, :].set(w1.astype(jnp.bfloat16))
    b1p = b1.reshape(1, HIDDEN_SIZE).astype(jnp.float32)
    w2p = jnp.zeros((HIDDEN_SIZE, OUT_PAD), jnp.bfloat16)
    w2p = w2p.at[:, :1].set(w2.reshape(HIDDEN_SIZE, 1).astype(jnp.bfloat16))
    b2p = jnp.zeros((1, OUT_PAD), jnp.float32)
    b2p = b2p.at[:, :1].set(b2.reshape(1, 1).astype(jnp.float32))

    out = pl.pallas_call(
        _disc_kernel,
        out_shape=jax.ShapeDtypeStruct((n_pad, OUT_PAD), jnp.float32),
        grid=(n_pad // tm,),
        in_specs=[
            pl.BlockSpec((tm, K_PAD), lambda i: (i, 0)),                # x tile
            pl.BlockSpec((K_PAD, HIDDEN_SIZE), lambda i: (0, 0)),       # W1
            pl.BlockSpec((1, HIDDEN_SIZE), lambda i: (0, 0)),           # b1
            pl.BlockSpec((HIDDEN_SIZE, OUT_PAD), lambda i: (0, 0)),     # W2 (padded)
            pl.BlockSpec((1, OUT_PAD), lambda i: (0, 0)),               # b2 (padded)
        ],
        out_specs=pl.BlockSpec((tm, OUT_PAD), lambda i: (i, 0)),
        compiler_params=pltpu.CompilerParams(
            dimension_semantics=("parallel",),
        ),
    )(xp, w1p, b1p, w2p, b2p)

    # Drop batch padding and the 127 dummy output lanes.
    return out[:n, :1]


def discriminator_ref(x, w1, b1, w2, b2):
    h = x @ w1 + b1.reshape(1, -1)
    h = jnp.where(h > 0, h, 0.2 * h)
    logits = h @ w2.reshape(-1, 1) + b2.reshape(1, 1)
    return jax.nn.sigmoid(logits)


if __name__ == "__main__":
    key = jax.random.PRNGKey(0)
    k_x, k_w1, k_b1, k_w2, k_b2 = jax.random.split(key, 5)

    batch = 64  # small test batch (not a power-of-two multiple of tm=512)

    # Deterministic synthetic parameters (PyTorch-like uniform init bounds).
    bound1 = 1.0 / (IMAGE_SIZE ** 0.5)
    bound2 = 1.0 / (HIDDEN_SIZE ** 0.5)
    x = jax.random.normal(k_x, (batch, IMAGE_SIZE), dtype=jnp.float32)
    w1 = jax.random.uniform(k_w1, (IMAGE_SIZE, HIDDEN_SIZE), jnp.float32,
                            -bound1, bound1)
    b1 = jax.random.uniform(k_b1, (HIDDEN_SIZE,), jnp.float32, -bound1, bound1)
    w2 = jax.random.uniform(k_w2, (HIDDEN_SIZE, 1), jnp.float32,
                            -bound2, bound2)
    b2 = jax.random.uniform(k_b2, (1,), jnp.float32, -bound2, bound2)

    out = discriminator_forward(x, w1, b1, w2, b2)
    out = jax.block_until_ready(out)

    ref = discriminator_ref(x, w1, b1, w2, b2)
    assert out.shape == (batch, 1), out.shape
    # bf16 inputs/weights -> relaxed tolerance vs the f32 reference.
    assert jnp.allclose(out, ref, atol=2e-2, rtol=2e-2), (
        f"max err = {jnp.max(jnp.abs(out - ref))}")

    print("KERNEL_OK")
</pallas_src>

<mosaic_0001>
module attributes {stable_mosaic.version = 11 : i64} {
  func.func @_disc_kernel(%arg0: i32, %arg1: memref<64x896xbf16, #tpu.memory_space<vmem>>, %arg2: memref<896x256xbf16, #tpu.memory_space<vmem>>, %arg3: memref<1x256xf32, #tpu.memory_space<vmem>>, %arg4: memref<256x128xbf16, #tpu.memory_space<vmem>>, %arg5: memref<1x128xf32, #tpu.memory_space<vmem>>, %arg6: memref<64x128xf32, #tpu.memory_space<vmem>>) attributes {dimension_semantics = [#tpu.dimension_semantics<parallel>], iteration_bounds = array<i64: 1>, scalar_prefetch = 0 : i64, scratch_operands = 0 : i64, tpu.core_type = #tpu.core_type<tc>, window_params = [{transform_indices = @transform_0, window_bounds = array<i64: 64, 896>}, {pipeline_mode = #tpu.pipeline_mode<synchronous>, transform_indices = @transform_1, window_bounds = array<i64: 896, 256>}, {pipeline_mode = #tpu.pipeline_mode<synchronous>, transform_indices = @transform_2, window_bounds = array<i64: 1, 256>}, {pipeline_mode = #tpu.pipeline_mode<synchronous>, transform_indices = @transform_3, window_bounds = array<i64: 256, 128>}, {pipeline_mode = #tpu.pipeline_mode<synchronous>, transform_indices = @transform_4, window_bounds = array<i64: 1, 128>}, {transform_indices = @transform_5, window_bounds = array<i64: 64, 128>}]} {
    %c0 = arith.constant 0 : index
    %c0_0 = arith.constant 0 : index
    %0 = vector.load %arg1[%c0, %c0_0] : memref<64x896xbf16, #tpu.memory_space<vmem>>, vector<64x896xbf16>
    %c0_1 = arith.constant 0 : index
    %c0_2 = arith.constant 0 : index
    %1 = vector.load %arg2[%c0_1, %c0_2] : memref<896x256xbf16, #tpu.memory_space<vmem>>, vector<896x256xbf16>
    %cst = arith.constant dense<0.000000e+00> : vector<64x256xf32>
    %2 = tpu.matmul %0, %1, %cst {dimension_numbers = #tpu.dot_dimension_numbers<[1], [0], [0], [1], [0, 0, 1, 1], [], []>} : vector<64x896xbf16>, vector<896x256xbf16>, vector<64x256xf32> -> vector<64x256xf32>
    %c0_3 = arith.constant 0 : index
    %c0_4 = arith.constant 0 : index
    %3 = vector.load %arg3[%c0_3, %c0_4] : memref<1x256xf32, #tpu.memory_space<vmem>>, vector<1x256xf32>
    %4 = vector.broadcast %3 : vector<1x256xf32> to vector<64x256xf32>
    %5 = arith.addf %2, %4 : vector<64x256xf32>
    %cst_5 = arith.constant 0.000000e+00 : f32
    %6 = vector.broadcast %cst_5 : f32 to vector<64x256xf32>
    %7 = arith.cmpf ogt, %5, %6 : vector<64x256xf32>
    %cst_6 = arith.constant 2.000000e-01 : f32
    %8 = vector.broadcast %cst_6 : f32 to vector<64x256xf32>
    %9 = arith.mulf %8, %5 : vector<64x256xf32>
    %10 = arith.select %7, %5, %9 : vector<64x256xi1>, vector<64x256xf32>
    %11 = arith.truncf %10 : vector<64x256xf32> to vector<64x256xbf16>
    %c0_7 = arith.constant 0 : index
    %c0_8 = arith.constant 0 : index
    %12 = vector.load %arg4[%c0_7, %c0_8] : memref<256x128xbf16, #tpu.memory_space<vmem>>, vector<256x128xbf16>
    %cst_9 = arith.constant dense<0.000000e+00> : vector<64x128xf32>
    %13 = tpu.matmul %11, %12, %cst_9 {dimension_numbers = #tpu.dot_dimension_numbers<[1], [0], [0], [1], [0, 0, 1, 1], [], []>} : vector<64x256xbf16>, vector<256x128xbf16>, vector<64x128xf32> -> vector<64x128xf32>
    %c0_10 = arith.constant 0 : index
    %c0_11 = arith.constant 0 : index
    %14 = vector.load %arg5[%c0_10, %c0_11] : memref<1x128xf32, #tpu.memory_space<vmem>>, vector<1x128xf32>
    %15 = vector.broadcast %14 : vector<1x128xf32> to vector<64x128xf32>
    %16 = arith.addf %13, %15 : vector<64x128xf32>
    %cst_12 = arith.constant 0.000000e+00 : f32
    %17 = vector.broadcast %cst_12 : f32 to vector<64x128xf32>
    %18 = arith.subf %17, %16 : vector<64x128xf32>
    %19 = math.exp %18 : vector<64x128xf32>
    %cst_13 = arith.constant 1.000000e+00 : f32
    %20 = vector.broadcast %cst_13 : f32 to vector<64x128xf32>
    %21 = arith.addf %20, %19 : vector<64x128xf32>
    %22 = tpu.reciprocal %21 {approx = true} : vector<64x128xf32> -> vector<64x128xf32>
    %c0_14 = arith.constant 0 : index
    %c0_15 = arith.constant 0 : index
    %23 = vector.load %arg6[%c0_14, %c0_15] : memref<64x128xf32, #tpu.memory_space<vmem>>, vector<64x128xf32>
    tpu.vector_store %arg6[%c0_14, %c0_15], %22 {strides = array<i32>} : memref<64x128xf32, #tpu.memory_space<vmem>>, vector<64x128xf32>,
    return
  }
  func.func @transform_0(%arg0: i32) -> (i32, i32) {
    %c0_i32 = arith.constant 0 : i32
    %c0_i32_0 = arith.constant 0 : i32
    return %arg0, %c0_i32 : i32, i32
  }
  func.func @transform_1(%arg0: i32) -> (i32, i32) {
    %c0_i32 = arith.constant 0 : i32
    %c0_i32_0 = arith.constant 0 : i32
    %c0_i32_1 = arith.constant 0 : i32
    return %c0_i32, %c0_i32_0 : i32, i32
  }
  func.func @transform_2(%arg0: i32) -> (i32, i32) {
    %c0_i32 = arith.constant 0 : i32
    %c0_i32_0 = arith.constant 0 : i32
    %c0_i32_1 = arith.constant 0 : i32
    return %c0_i32, %c0_i32_0 : i32, i32
  }
  func.func @transform_3(%arg0: i32) -> (i32, i32) {
    %c0_i32 = arith.constant 0 : i32
    %c0_i32_0 = arith.constant 0 : i32
    %c0_i32_1 = arith.constant 0 : i32
    return %c0_i32, %c0_i32_0 : i32, i32
  }
  func.func @transform_4(%arg0: i32) -> (i32, i32) {
    %c0_i32 = arith.constant 0 : i32
    %c0_i32_0 = arith.constant 0 : i32
    %c0_i32_1 = arith.constant 0 : i32
    return %c0_i32, %c0_i32_0 : i32, i32
  }
  func.func @transform_5(%arg0: i32) -> (i32, i32) {
    %c0_i32 = arith.constant 0 : i32
    %c0_i32_0 = arith.constant 0 : i32
    return %arg0, %c0_i32 : i32, i32
  }
}

</mosaic_0001>

<llo_original>
// kernel: tpu_custom_call.1
$region0: #{tpu_custom_call.1}
  #allocation0 [shape = 'u32[]', space=smem, size = 0x4, offset = 0x4, fixed_abs, tag = 'smem constant byte address 0x4 - core index']
  #allocation1 [shape = 'u32[144,128]{1,0:T(1,128)}', space=vmem, size = 0x12000, scoped, tag = 'internal scratch']
  %s0 = inlined_call_operand.hbm [shape: bf16[64,896], index: 0, kind: input, shape index: {}]
  %s1 = inlined_call_operand.hbm [shape: bf16[896,256], index: 1, kind: input, shape index: {}]
  %s2 = inlined_call_operand.vmem [shape: f32[1,256], index: 2, kind: input, shape index: {}]
  %s3 = inlined_call_operand.hbm [shape: bf16[256,128], index: 3, kind: input, shape index: {}]
  %s4 = inlined_call_operand.vmem [shape: f32[1,128], index: 4, kind: input, shape index: {}]
  %s5 = inlined_call_operand.hbm [shape: f32[64,128], index: 5, kind: output, shape index: {}]
  %s6 = sld [smem:[#allocation0]]
  $region42: #{tpu_custom_call.1} parent=0
    _
  %s8 = ssub.s32 1, %s6
  %s9 = scalar_select 0, %s8, %s6
  $region1: #{tpu_custom_call.1} parent=0
    #allocation2 [shape = 'u8[114688]{0}', space=vmem, size = 0x1c000, scoped, tag = 'input window, operand 0, single buffered']
    #allocation3 [shape = 's32[1]{0}', space=sflag, size = 0x4, scoped, tag = 'scoped memory for tpu_custom_call.1']
    #allocation4 [shape = 's32[1]{0}', space=sflag, size = 0x4, scoped, tag = 'scoped memory for tpu_custom_call.1']
    #allocation5 [shape = 'u8[458752]{0}', space=vmem, size = 0x70000, scoped, tag = 'input window, operand 1, single buffered']
    #allocation6 [shape = 's32[1]{0}', space=sflag, size = 0x4, scoped, tag = 'scoped memory for tpu_custom_call.1']
    #allocation7 [shape = 'u8[65536]{0}', space=vmem, size = 0x10000, scoped, tag = 'input window, operand 3, single buffered']
    #allocation8 [shape = 'u8[32768]{0}', space=vmem, size = 0x8000, scoped, tag = 'output window, operand 0, single buffered']
    %10 = vsyncpa [#allocation3], 0
    %11 = vsyncpa [#allocation6], 0
    %12 = vsyncpa [#allocation4], 0
    // Predicated region
    $region2: #{tpu_custom_call.1} parent=1 // pred_check
      _
    $region3: #{tpu_custom_call.1} parent=1 // pred_check_branch
      %14 = sbr.rel (0) target = $region5
    $region4: #{tpu_custom_call.1} parent=1 // pred_region
      %s16 = ssub.s32 3584, 3584
      %17 = vsyncadd [#allocation3], %s16
      %s18 = sshll.u32 [#allocation2], 4
      %s19 = int_to_ptr.vmem [resolvable:$true] %s18
      %24 = dma.hbm_to_vmem [thread:$0]  %s0, 3584, %s19, [#allocation3], 448, 448, 28
    $region5: #{tpu_custom_call.1} parent=1 // pred_fallthru
      _
    // Predicated region
    $region6: #{tpu_custom_call.1} parent=1 // pred_check
      _
    $region7: #{tpu_custom_call.1} parent=1 // pred_check_branch
      %26 = sbr.rel (0) target = $region9
    $region8: #{tpu_custom_call.1} parent=1 // pred_region
      %s28 = ssub.s32 14336, 14336
      %29 = vsyncadd [#allocation6], %s28
      %s30 = sshll.u32 [#allocation5], 4
      %s31 = int_to_ptr.vmem [resolvable:$true] %s30
      %36 = dma.hbm_to_vmem [thread:$0]  %s1, 14336, %s31, [#allocation6], 128, 128, 8
    $region9: #{tpu_custom_call.1} parent=1 // pred_fallthru
      _
    // Predicated region
    $region10: #{tpu_custom_call.1} parent=1 // pred_check
      _
    $region11: #{tpu_custom_call.1} parent=1 // pred_check_branch
      %38 = sbr.rel (0) target = $region13
    $region12: #{tpu_custom_call.1} parent=1 // pred_region
      _
    $region13: #{tpu_custom_call.1} parent=1 // pred_fallthru
      _
    // Predicated region
    $region14: #{tpu_custom_call.1} parent=1 // pred_check
      _
    $region15: #{tpu_custom_call.1} parent=1 // pred_check_branch
      %40 = sbr.rel (0) target = $region17
    $region16: #{tpu_custom_call.1} parent=1 // pred_region
      %s42 = ssub.s32 2048, 2048
      %43 = vsyncadd [#allocation6], %s42
      %s44 = sshll.u32 [#allocation7], 4
      %s45 = int_to_ptr.vmem [resolvable:$true] %s44
      %50 = dma.hbm_to_vmem [thread:$0]  %s3, 2048, %s45, [#allocation6], 64, 64, 4
    $region17: #{tpu_custom_call.1} parent=1 // pred_fallthru
      _
    // Predicated region
    $region18: #{tpu_custom_call.1} parent=1 // pred_check
      _
    $region19: #{tpu_custom_call.1} parent=1 // pred_check_branch
      %52 = sbr.rel (0) target = $region21
    $region20: #{tpu_custom_call.1} parent=1 // pred_region
      _
    $region21: #{tpu_custom_call.1} parent=1 // pred_fallthru
      _
    // Predicated region
    $region22: #{tpu_custom_call.1} parent=1 // pred_check
      _
    $region23: #{tpu_custom_call.1} parent=1 // pred_check_branch
      %54 = sbr.rel (0) target = $region25
    $region24: #{tpu_custom_call.1} parent=1 // pred_region
      %55 = dma.done [#allocation3], 3584
    $region25: #{tpu_custom_call.1} parent=1 // pred_fallthru
      _
    // Predicated region
    $region26: #{tpu_custom_call.1} parent=1 // pred_check
      _
    $region27: #{tpu_custom_call.1} parent=1 // pred_check_branch
      %57 = sbr.rel (0) target = $region29
    $region28: #{tpu_custom_call.1} parent=1 // pred_region
      %58 = dma.done [#allocation6], 14336
    $region29: #{tpu_custom_call.1} parent=1 // pred_fallthru
      _
    // Predicated region
    $region30: #{tpu_custom_call.1} parent=1 // pred_check
      _
    $region31: #{tpu_custom_call.1} parent=1 // pred_check_branch
      %60 = sbr.rel (0) target = $region33
    $region32: #{tpu_custom_call.1} parent=1 // pred_region
      %61 = dma.done [#allocation6], 2048
    $region33: #{tpu_custom_call.1} parent=1 // pred_fallthru
      _
    %v63 = vld [vmem:[#allocation2] sm:$0xff]
    %v64 = vld [vmem:[#allocation2 + $0x8] sm:$0xff]
    %v65 = vld [vmem:[#allocation2 + $0x10] sm:$0xff]
    %v66 = vld [vmem:[#allocation2 + $0x18] sm:$0xf]
    %v67 = vld [vmem:[#allocation2 + $0x1c] sm:$0xff]
    %v68 = vld [vmem:[#allocation2 + $0x24] sm:$0xff]
    %v69 = vld [vmem:[#allocation2 + $0x2c] sm:$0xff]
    %v70 = vld [vmem:[#allocation2 + $0x34] sm:$0xf]
    %v71 = vld [vmem:[#allocation2 + $0x38] sm:$0xff]
    %v72 = vld [vmem:[#allocation2 + $0x40] sm:$0xff]
    %v73 = vld [vmem:[#allocation2 + $0x48] sm:$0xff]
    %v74 = vld [vmem:[#allocation2 + $0x50] sm:$0xf]
    %v75 = vld [vmem:[#allocation2 + $0x54] sm:$0xff]
    %v76 = vld [vmem:[#allocation2 + $0x5c] sm:$0xff]
    %v77 = vld [vmem:[#allocation2 + $0x64] sm:$0xff]
    %v78 = vld [vmem:[#allocation2 + $0x6c] sm:$0xf]
    %v79 = vld [vmem:[#allocation2 + $0x70] sm:$0xff]
    %v80 = vld [vmem:[#allocation2 + $0x78] sm:$0xff]
    %v81 = vld [vmem:[#allocation2 + $0x80] sm:$0xff]
    %v82 = vld [vmem:[#allocation2 + $0x88] sm:$0xf]
    %v83 = vld [vmem:[#allocation2 + $0x8c] sm:$0xff]
    %v84 = vld [vmem:[#allocation2 + $0x94] sm:$0xff]
    %v85 = vld [vmem:[#allocation2 + $0x9c] sm:$0xff]
    %v86 = vld [vmem:[#allocation2 + $0xa4] sm:$0xf]
    %v87 = vld [vmem:[#allocation2 + $0xa8] sm:$0xff]
    %v88 = vld [vmem:[#allocation2 + $0xb0] sm:$0xff]
    %v89 = vld [vmem:[#allocation2 + $0xb8] sm:$0xff]
    %v90 = vld [vmem:[#allocation2 + $0xc0] sm:$0xf]
    %v91 = vld [vmem:[#allocation2 + $0xc4] sm:$0xff]
    %v92 = vld [vmem:[#allocation2 + $0xcc] sm:$0xff]
    %v93 = vld [vmem:[#allocation2 + $0xd4] sm:$0xff]
    %v94 = vld [vmem:[#allocation2 + $0xdc] sm:$0xf]
    %v95 = vld [vmem:[#allocation5] sm:$0xff]
    %v96 = vld [vmem:[#allocation5 + $0x8] sm:$0xff]
    %v97 = vld [vmem:[#allocation5 + $0x10] sm:$0xff]
    %v98 = vld [vmem:[#allocation5 + $0x18] sm:$0xff]
    %v99 = vld [vmem:[#allocation5 + $0x20] sm:$0xff]
    %v100 = vld [vmem:[#allocation5 + $0x28] sm:$0xff]
    %v101 = vld [vmem:[#allocation5 + $0x30] sm:$0xff]
    %v102 = vld [vmem:[#allocation5 + $0x38] sm:$0xff]
    %v103 = vld [vmem:[#allocation5 + $0x40] sm:$0xff]
    %v104 = vld [vmem:[#allocation5 + $0x48] sm:$0xff]
    %v105 = vld [vmem:[#allocation5 + $0x50] sm:$0xff]
    %v106 = vld [vmem:[#allocation5 + $0x58] sm:$0xff]
    %v107 = vld [vmem:[#allocation5 + $0x60] sm:$0xff]
    %v108 = vld [vmem:[#allocation5 + $0x68] sm:$0xff]
    %v109 = vld [vmem:[#allocation5 + $0x70] sm:$0xff]
    %v110 = vld [vmem:[#allocation5 + $0x78] sm:$0xff]
    %v111 = vld [vmem:[#allocation5 + $0x80] sm:$0xff]
    %v112 = vld [vmem:[#allocation5 + $0x88] sm:$0xff]
    %v113 = vld [vmem:[#allocation5 + $0x90] sm:$0xff]
    %v114 = vld [vmem:[#allocation5 + $0x98] sm:$0xff]
    %v115 = vld [vmem:[#allocation5 + $0xa0] sm:$0xff]
    %v116 = vld [vmem:[#allocation5 + $0xa8] sm:$0xff]
    %v117 = vld [vmem:[#allocation5 + $0xb0] sm:$0xff]
    %v118 = vld [vmem:[#allocation5 + $0xb8] sm:$0xff]
    %v119 = vld [vmem:[#allocation5 + $0xc0] sm:$0xff]
    %v120 = vld [vmem:[#allocation5 + $0xc8] sm:$0xff]
    %v121 = vld [vmem:[#allocation5 + $0xd0] sm:$0xff]
    %v122 = vld [vmem:[#allocation5 + $0xd8] sm:$0xff]
    %v123 = vld [vmem:[#allocation5 + $0xe0] sm:$0xff]
    %v124 = vld [vmem:[#allocation5 + $0xe8] sm:$0xff]
    %v125 = vld [vmem:[#allocation5 + $0xf0] sm:$0xff]
    %v126 = vld [vmem:[#allocation5 + $0xf8] sm:$0xff]
    %v127 = vld [vmem:[#allocation5 + $0x100] sm:$0xff]
    %v128 = vld [vmem:[#allocation5 + $0x108] sm:$0xff]
    %v129 = vld [vmem:[#allocation5 + $0x110] sm:$0xff]
    %v130 = vld [vmem:[#allocation5 + $0x118] sm:$0xff]
    %v131 = vld [vmem:[#allocation5 + $0x120] sm:$0xff]
    %v132 = vld [vmem:[#allocation5 + $0x128] sm:$0xff]
    %v133 = vld [vmem:[#allocation5 + $0x130] sm:$0xff]
    %v134 = vld [vmem:[#allocation5 + $0x138] sm:$0xff]
    %v135 = vld [vmem:[#allocation5 + $0x140] sm:$0xff]
    %v136 = vld [vmem:[#allocation5 + $0x148] sm:$0xff]
    %v137 = vld [vmem:[#allocation5 + $0x150] sm:$0xff]
    %v138 = vld [vmem:[#allocation5 + $0x158] sm:$0xff]
    %v139 = vld [vmem:[#allocation5 + $0x160] sm:$0xff]
    %v140 = vld [vmem:[#allocation5 + $0x168] sm:$0xff]
    %v141 = vld [vmem:[#allocation5 + $0x170] sm:$0xff]
    %v142 = vld [vmem:[#allocation5 + $0x178] sm:$0xff]
    %v143 = vld [vmem:[#allocation5 + $0x180] sm:$0xff]
    %v144 = vld [vmem:[#allocation5 + $0x188] sm:$0xff]
    %v145 = vld [vmem:[#allocation5 + $0x190] sm:$0xff]
    %v146 = vld [vmem:[#allocation5 + $0x198] sm:$0xff]
    %v147 = vld [vmem:[#allocation5 + $0x1a0] sm:$0xff]
    %v148 = vld [vmem:[#allocation5 + $0x1a8] sm:$0xff]
    %v149 = vld [vmem:[#allocation5 + $0x1b0] sm:$0xff]
    %v150 = vld [vmem:[#allocation5 + $0x1b8] sm:$0xff]
    %v151 = vld [vmem:[#allocation5 + $0x1c0] sm:$0xff]
    %v152 = vld [vmem:[#allocation5 + $0x1c8] sm:$0xff]
    %v153 = vld [vmem:[#allocation5 + $0x1d0] sm:$0xff]
    %v154 = vld [vmem:[#allocation5 + $0x1d8] sm:$0xff]
    %v155 = vld [vmem:[#allocation5 + $0x1e0] sm:$0xff]
    %v156 = vld [vmem:[#allocation5 + $0x1e8] sm:$0xff]
    %v157 = vld [vmem:[#allocation5 + $0x1f0] sm:$0xff]
    %v158 = vld [vmem:[#allocation5 + $0x1f8] sm:$0xff]
    %v159 = vld [vmem:[#allocation5 + $0x200] sm:$0xff]
    %v160 = vld [vmem:[#allocation5 + $0x208] sm:$0xff]
    %v161 = vld [vmem:[#allocation5 + $0x210] sm:$0xff]
    %v162 = vld [vmem:[#allocation5 + $0x218] sm:$0xff]
    %v163 = vld [vmem:[#allocation5 + $0x220] sm:$0xff]
    %v164 = vld [vmem:[#allocation5 + $0x228] sm:$0xff]
    %v165 = vld [vmem:[#allocation5 + $0x230] sm:$0xff]
    %v166 = vld [vmem:[#allocation5 + $0x238] sm:$0xff]
    %v167 = vld [vmem:[#allocation5 + $0x240] sm:$0xff]
    %v168 = vld [vmem:[#allocation5 + $0x248] sm:$0xff]
    %v169 = vld [vmem:[#allocation5 + $0x250] sm:$0xff]
    %v170 = vld [vmem:[#allocation5 + $0x258] sm:$0xff]
    %v171 = vld [vmem:[#allocation5 + $0x260] sm:$0xff]
    %v172 = vld [vmem:[#allocation5 + $0x268] sm:$0xff]
    %v173 = vld [vmem:[#allocation5 + $0x270] sm:$0xff]
    %v174 = vld [vmem:[#allocation5 + $0x278] sm:$0xff]
    %v175 = vld [vmem:[#allocation5 + $0x280] sm:$0xff]
    %v176 = vld [vmem:[#allocation5 + $0x288] sm:$0xff]
    %v177 = vld [vmem:[#allocation5 + $0x290] sm:$0xff]
    %v178 = vld [vmem:[#allocation5 + $0x298] sm:$0xff]
    %v179 = vld [vmem:[#allocation5 + $0x2a0] sm:$0xff]
    %v180 = vld [vmem:[#allocation5 + $0x2a8] sm:$0xff]
    %v181 = vld [vmem:[#allocation5 + $0x2b0] sm:$0xff]
    %v182 = vld [vmem:[#allocation5 + $0x2b8] sm:$0xff]
    %v183 = vld [vmem:[#allocation5 + $0x2c0] sm:$0xff]
    %v184 = vld [vmem:[#allocation5 + $0x2c8] sm:$0xff]
    %v185 = vld [vmem:[#allocation5 + $0x2d0] sm:$0xff]
    %v186 = vld [vmem:[#allocation5 + $0x2d8] sm:$0xff]
    %v187 = vld [vmem:[#allocation5 + $0x2e0] sm:$0xff]
    %v188 = vld [vmem:[#allocation5 + $0x2e8] sm:$0xff]
    %v189 = vld [vmem:[#allocation5 + $0x2f0] sm:$0xff]
    %v190 = vld [vmem:[#allocation5 + $0x2f8] sm:$0xff]
    %v191 = vld [vmem:[#allocation5 + $0x300] sm:$0xff]
    %v192 = vld [vmem:[#allocation5 + $0x308] sm:$0xff]
    %v193 = vld [vmem:[#allocation5 + $0x310] sm:$0xff]
    %v194 = vld [vmem:[#allocation5 + $0x318] sm:$0xff]
    %v195 = vld [vmem:[#allocation5 + $0x320] sm:$0xff]
    %v196 = vld [vmem:[#allocation5 + $0x328] sm:$0xff]
    %v197 = vld [vmem:[#allocation5 + $0x330] sm:$0xff]
    %v198 = vld [vmem:[#allocation5 + $0x338] sm:$0xff]
    %v199 = vld [vmem:[#allocation5 + $0x340] sm:$0xff]
    %v200 = vld [vmem:[#allocation5 + $0x348] sm:$0xff]
    %v201 = vld [vmem:[#allocation5 + $0x350] sm:$0xff]
    %v202 = vld [vmem:[#allocation5 + $0x358] sm:$0xff]
    %v203 = vld [vmem:[#allocation5 + $0x360] sm:$0xff]
    %v204 = vld [vmem:[#allocation5 + $0x368] sm:$0xff]
    %v205 = vld [vmem:[#allocation5 + $0x370] sm:$0xff]
    %v206 = vld [vmem:[#allocation5 + $0x378] sm:$0xff]
    %v207 = vld [vmem:[%s2] sm:$0x3]
    %v209 = vlaneseq
    %v210 = vshrl.u32 %v209, 7
    %v211 = vsub.s32 0, %v210
    %v212 = vrot.slane %v207, %v211
    %v213 = vlaneseq
    %v214 = vshrl.u32 %v213, 7
    %v215 = vsub.s32 1, %v214
    %v216 = vrot.slane %v207, %v215
    %v251 = vunpack.c.l.b16 %v63
    %v252 = vunpack.c.h.b16 %v63
    %v253 = vunpack.c.l.b16 %v64
    %v254 = vunpack.c.h.b16 %v64
    %v255 = vunpack.c.l.b16 %v65
    %v256 = vunpack.c.h.b16 %v65
    %v257 = vunpack.c.l.b16 %v66
    %v258 = vunpack.c.l.b16 %v67
    %v259 = vunpack.c.h.b16 %v67
    %v260 = vunpack.c.l.b16 %v68
    %v261 = vunpack.c.h.b16 %v68
    %v262 = vunpack.c.l.b16 %v69
    %v263 = vunpack.c.h.b16 %v69
    %v264 = vunpack.c.l.b16 %v70
    %v265 = vunpack.c.l.b16 %v71
    %v266 = vunpack.c.h.b16 %v71
    %v267 = vunpack.c.l.b16 %v72
    %v268 = vunpack.c.h.b16 %v72
    %v269 = vunpack.c.l.b16 %v73
    %v270 = vunpack.c.h.b16 %v73
    %v271 = vunpack.c.l.b16 %v74
    %v272 = vunpack.c.l.b16 %v75
    %v273 = vunpack.c.h.b16 %v75
    %v274 = vunpack.c.l.b16 %v76
    %v275 = vunpack.c.h.b16 %v76
    %v276 = vunpack.c.l.b16 %v77
    %v277 = vunpack.c.h.b16 %v77
    %v278 = vunpack.c.l.b16 %v78
    %v279 = vunpack.c.l.b16 %v79
    %v280 = vunpack.c.h.b16 %v79
    %v281 = vunpack.c.l.b16 %v80
    %v282 = vunpack.c.h.b16 %v80
    %v283 = vunpack.c.l.b16 %v81
    %v284 = vunpack.c.h.b16 %v81
    %v285 = vunpack.c.l.b16 %v82
    %v286 = vunpack.c.l.b16 %v83
    %v287 = vunpack.c.h.b16 %v83
    %v288 = vunpack.c.l.b16 %v84
    %v289 = vunpack.c.h.b16 %v84
    %v290 = vunpack.c.l.b16 %v85
    %v291 = vunpack.c.h.b16 %v85
    %v292 = vunpack.c.l.b16 %v86
    %v293 = vunpack.c.l.b16 %v87
    %v294 = vunpack.c.h.b16 %v87
    %v295 = vunpack.c.l.b16 %v88
    %v296 = vunpack.c.h.b16 %v88
    %v297 = vunpack.c.l.b16 %v89
    %v298 = vunpack.c.h.b16 %v89
    %v299 = vunpack.c.l.b16 %v90
    %v300 = vunpack.c.l.b16 %v91
    %v301 = vunpack.c.h.b16 %v91
    %v302 = vunpack.c.l.b16 %v92
    %v303 = vunpack.c.h.b16 %v92
    %v304 = vunpack.c.l.b16 %v93
    %v305 = vunpack.c.h.b16 %v93
    %v306 = vunpack.c.l.b16 %v94
    %v307 = vpack.c.b16 %v258, %v251
    %v308 = vpack.c.b16 %v259, %v252
    %v309 = vpack.c.b16 %v260, %v253
    %v310 = vpack.c.b16 %v261, %v254
    %v311 = vpack.c.b16 %v262, %v255
    %v312 = vpack.c.b16 %v263, %v256
    %v313 = vpack.c.b16 %v264, %v257
    %v314 = vpack.c.b16 %v272, %v265
    %v315 = vpack.c.b16 %v273, %v266
    %v316 = vpack.c.b16 %v274, %v267
    %v317 = vpack.c.b16 %v275, %v268
    %v318 = vpack.c.b16 %v276, %v269
    %v319 = vpack.c.b16 %v277, %v270
    %v320 = vpack.c.b16 %v278, %v271
    %v321 = vpack.c.b16 %v286, %v279
    %v322 = vpack.c.b16 %v287, %v280
    %v323 = vpack.c.b16 %v288, %v281
    %v324 = vpack.c.b16 %v289, %v282
    %v325 = vpack.c.b16 %v290, %v283
    %v326 = vpack.c.b16 %v291, %v284
    %v327 = vpack.c.b16 %v292, %v285
    %v328 = vpack.c.b16 %v300, %v293
    %v329 = vpack.c.b16 %v301, %v294
    %v330 = vpack.c.b16 %v302, %v295
    %v331 = vpack.c.b16 %v303, %v296
    %v332 = vpack.c.b16 %v304, %v297
    %v333 = vpack.c.b16 %v305, %v298
    %v334 = vpack.c.b16 %v306, %v299
    %v475 = vunpack.c.l.b16 %v95
    %v476 = vunpack.c.h.b16 %v95
    %v477 = vunpack.c.l.b16 %v96
    %v478 = vunpack.c.h.b16 %v96
    %v479 = vunpack.c.l.b16 %v97
    %v480 = vunpack.c.h.b16 %v97
    %v481 = vunpack.c.l.b16 %v98
    %v482 = vunpack.c.h.b16 %v98
    %v483 = vunpack.c.l.b16 %v99
    %v484 = vunpack.c.h.b16 %v99
    %v485 = vunpack.c.l.b16 %v100
    %v486 = vunpack.c.h.b16 %v100
    %v487 = vunpack.c.l.b16 %v101
    %v488 = vunpack.c.h.b16 %v101
    %v489 = vunpack.c.l.b16 %v102
    %v490 = vunpack.c.h.b16 %v102
    %v491 = vunpack.c.l.b16 %v103
    %v492 = vunpack.c.h.b16 %v103
    %v493 = vunpack.c.l.b16 %v104
    %v494 = vunpack.c.h.b16 %v104
    %v495 = vunpack.c.l.b16 %v105
    %v496 = vunpack.c.h.b16 %v105
    %v497 = vunpack.c.l.b16 %v106
    %v498 = vunpack.c.h.b16 %v106
    %v499 = vunpack.c.l.b16 %v107
    %v500 = vunpack.c.h.b16 %v107
    %v501 = vunpack.c.l.b16 %v108
    %v502 = vunpack.c.h.b16 %v108
    %v503 = vunpack.c.l.b16 %v109
    %v504 = vunpack.c.h.b16 %v109
    %v505 = vunpack.c.l.b16 %v110
    %v506 = vunpack.c.h.b16 %v110
    %v507 = vunpack.c.l.b16 %v111
    %v508 = vunpack.c.h.b16 %v111
    %v509 = vunpack.c.l.b16 %v112
    %v510 = vunpack.c.h.b16 %v112
    %v511 = vunpack.c.l.b16 %v113
    %v512 = vunpack.c.h.b16 %v113
    %v513 = vunpack.c.l.b16 %v114
    %v514 = vunpack.c.h.b16 %v114
    %v515 = vunpack.c.l.b16 %v115
    %v516 = vunpack.c.h.b16 %v115
    %v517 = vunpack.c.l.b16 %v116
    %v518 = vunpack.c.h.b16 %v116
    %v519 = vunpack.c.l.b16 %v117
    %v520 = vunpack.c.h.b16 %v117
    %v521 = vunpack.c.l.b16 %v118
    %v522 = vunpack.c.h.b16 %v118
    %v523 = vunpack.c.l.b16 %v119
    %v524 = vunpack.c.h.b16 %v119
    %v525 = vunpack.c.l.b16 %v120
    %v526 = vunpack.c.h.b16 %v120
    %v527 = vunpack.c.l.b16 %v121
    %v528 = vunpack.c.h.b16 %v121
    %v529 = vunpack.c.l.b16 %v122
    %v530 = vunpack.c.h.b16 %v122
    %v531 = vunpack.c.l.b16 %v123
    %v532 = vunpack.c.h.b16 %v123
    %v533 = vunpack.c.l.b16 %v124
    %v534 = vunpack.c.h.b16 %v124
    %v535 = vunpack.c.l.b16 %v125
    %v536 = vunpack.c.h.b16 %v125
    %v537 = vunpack.c.l.b16 %v126
    %v538 = vunpack.c.h.b16 %v126
    %v539 = vunpack.c.l.b16 %v127
    %v540 = vunpack.c.h.b16 %v127
    %v541 = vunpack.c.l.b16 %v128
    %v542 = vunpack.c.h.b16 %v128
    %v543 = vunpack.c.l.b16 %v129
    %v544 = vunpack.c.h.b16 %v129
    %v545 = vunpack.c.l.b16 %v130
    %v546 = vunpack.c.h.b16 %v130
    %v547 = vunpack.c.l.b16 %v131
    %v548 = vunpack.c.h.b16 %v131
    %v549 = vunpack.c.l.b16 %v132
    %v550 = vunpack.c.h.b16 %v132
    %v551 = vunpack.c.l.b16 %v133
    %v552 = vunpack.c.h.b16 %v133
    %v553 = vunpack.c.l.b16 %v134
    %v554 = vunpack.c.h.b16 %v134
    %v555 = vunpack.c.l.b16 %v135
    %v556 = vunpack.c.h.b16 %v135
    %v557 = vunpack.c.l.b16 %v136
    %v558 = vunpack.c.h.b16 %v136
    %v559 = vunpack.c.l.b16 %v137
    %v560 = vunpack.c.h.b16 %v137
    %v561 = vunpack.c.l.b16 %v138
    %v562 = vunpack.c.h.b16 %v138
    %v563 = vunpack.c.l.b16 %v139
    %v564 = vunpack.c.h.b16 %v139
    %v565 = vunpack.c.l.b16 %v140
    %v566 = vunpack.c.h.b16 %v140
    %v567 = vunpack.c.l.b16 %v141
    %v568 = vunpack.c.h.b16 %v141
    %v569 = vunpack.c.l.b16 %v142
    %v570 = vunpack.c.h.b16 %v142
    %v571 = vunpack.c.l.b16 %v143
    %v572 = vunpack.c.h.b16 %v143
    %v573 = vunpack.c.l.b16 %v144
    %v574 = vunpack.c.h.b16 %v144
    %v575 = vunpack.c.l.b16 %v145
    %v576 = vunpack.c.h.b16 %v145
    %v577 = vunpack.c.l.b16 %v146
    %v578 = vunpack.c.h.b16 %v146
    %v579 = vunpack.c.l.b16 %v147
    %v580 = vunpack.c.h.b16 %v147
    %v581 = vunpack.c.l.b16 %v148
    %v582 = vunpack.c.h.b16 %v148
    %v583 = vunpack.c.l.b16 %v149
    %v584 = vunpack.c.h.b16 %v149
    %v585 = vunpack.c.l.b16 %v150
    %v586 = vunpack.c.h.b16 %v150
    %v587 = vunpack.c.l.b16 %v151
    %v588 = vunpack.c.h.b16 %v151
    %v589 = vunpack.c.l.b16 %v152
    %v590 = vunpack.c.h.b16 %v152
    %v591 = vunpack.c.l.b16 %v153
    %v592 = vunpack.c.h.b16 %v153
    %v593 = vunpack.c.l.b16 %v154
    %v594 = vunpack.c.h.b16 %v154
    %v595 = vunpack.c.l.b16 %v155
    %v596 = vunpack.c.h.b16 %v155
    %v597 = vunpack.c.l.b16 %v156
    %v598 = vunpack.c.h.b16 %v156
    %v599 = vunpack.c.l.b16 %v157
    %v600 = vunpack.c.h.b16 %v157
    %v601 = vunpack.c.l.b16 %v158
    %v602 = vunpack.c.h.b16 %v158
    %v603 = vunpack.c.l.b16 %v159
    %v604 = vunpack.c.h.b16 %v159
    %v605 = vunpack.c.l.b16 %v160
    %v606 = vunpack.c.h.b16 %v160
    %v607 = vunpack.c.l.b16 %v161
    %v608 = vunpack.c.h.b16 %v161
    %v609 = vunpack.c.l.b16 %v162
    %v610 = vunpack.c.h.b16 %v162
    %v611 = vunpack.c.l.b16 %v163
    %v612 = vunpack.c.h.b16 %v163
    %v613 = vunpack.c.l.b16 %v164
    %v614 = vunpack.c.h.b16 %v164
    %v615 = vunpack.c.l.b16 %v165
    %v616 = vunpack.c.h.b16 %v165
    %v617 = vunpack.c.l.b16 %v166
    %v618 = vunpack.c.h.b16 %v166
    %v619 = vunpack.c.l.b16 %v167
    %v620 = vunpack.c.h.b16 %v167
    %v621 = vunpack.c.l.b16 %v168
    %v622 = vunpack.c.h.b16 %v168
    %v623 = vunpack.c.l.b16 %v169
    %v624 = vunpack.c.h.b16 %v169
    %v625 = vunpack.c.l.b16 %v170
    %v626 = vunpack.c.h.b16 %v170
    %v627 = vunpack.c.l.b16 %v171
    %v628 = vunpack.c.h.b16 %v171
    %v629 = vunpack.c.l.b16 %v172
    %v630 = vunpack.c.h.b16 %v172
    %v631 = vunpack.c.l.b16 %v173
    %v632 = vunpack.c.h.b16 %v173
    %v633 = vunpack.c.l.b16 %v174
    %v634 = vunpack.c.h.b16 %v174
    %v635 = vunpack.c.l.b16 %v175
    %v636 = vunpack.c.h.b16 %v175
    %v637 = vunpack.c.l.b16 %v176
    %v638 = vunpack.c.h.b16 %v176
    %v639 = vunpack.c.l.b16 %v177
    %v640 = vunpack.c.h.b16 %v177
    %v641 = vunpack.c.l.b16 %v178
    %v642 = vunpack.c.h.b16 %v178
    %v643 = vunpack.c.l.b16 %v179
    %v644 = vunpack.c.h.b16 %v179
    %v645 = vunpack.c.l.b16 %v180
    %v646 = vunpack.c.h.b16 %v180
    %v647 = vunpack.c.l.b16 %v181
    %v648 = vunpack.c.h.b16 %v181
    %v649 = vunpack.c.l.b16 %v182
    %v650 = vunpack.c.h.b16 %v182
    %v651 = vunpack.c.l.b16 %v183
    %v652 = vunpack.c.h.b16 %v183
    %v653 = vunpack.c.l.b16 %v184
    %v654 = vunpack.c.h.b16 %v184
    %v655 = vunpack.c.l.b16 %v185
    %v656 = vunpack.c.h.b16 %v185
    %v657 = vunpack.c.l.b16 %v186
    %v658 = vunpack.c.h.b16 %v186
    %v659 = vunpack.c.l.b16 %v187
    %v660 = vunpack.c.h.b16 %v187
    %v661 = vunpack.c.l.b16 %v188
    %v662 = vunpack.c.h.b16 %v188
    %v663 = vunpack.c.l.b16 %v189
    %v664 = vunpack.c.h.b16 %v189
    %v665 = vunpack.c.l.b16 %v190
    %v666 = vunpack.c.h.b16 %v190
    %v667 = vunpack.c.l.b16 %v191
    %v668 = vunpack.c.h.b16 %v191
    %v669 = vunpack.c.l.b16 %v192
    %v670 = vunpack.c.h.b16 %v192
    %v671 = vunpack.c.l.b16 %v193
    %v672 = vunpack.c.h.b16 %v193
    %v673 = vunpack.c.l.b16 %v194
    %v674 = vunpack.c.h.b16 %v194
    %v675 = vunpack.c.l.b16 %v195
    %v676 = vunpack.c.h.b16 %v195
    %v677 = vunpack.c.l.b16 %v196
    %v678 = vunpack.c.h.b16 %v196
    %v679 = vunpack.c.l.b16 %v197
    %v680 = vunpack.c.h.b16 %v197
    %v681 = vunpack.c.l.b16 %v198
    %v682 = vunpack.c.h.b16 %v198
    %v683 = vunpack.c.l.b16 %v199
    %v684 = vunpack.c.h.b16 %v199
    %v685 = vunpack.c.l.b16 %v200
    %v686 = vunpack.c.h.b16 %v200
    %v687 = vunpack.c.l.b16 %v201
    %v688 = vunpack.c.h.b16 %v201
    %v689 = vunpack.c.l.b16 %v202
    %v690 = vunpack.c.h.b16 %v202
    %v691 = vunpack.c.l.b16 %v203
    %v692 = vunpack.c.h.b16 %v203
    %v693 = vunpack.c.l.b16 %v204
    %v694 = vunpack.c.h.b16 %v204
    %v695 = vunpack.c.l.b16 %v205
    %v696 = vunpack.c.h.b16 %v205
    %v697 = vunpack.c.l.b16 %v206
    %v698 = vunpack.c.h.b16 %v206
    %v699 = vpack.c.b16 %v477, %v475
    %v700 = vpack.c.b16 %v478, %v476
    %v701 = vpack.c.b16 %v481, %v479
    %v702 = vpack.c.b16 %v482, %v480
    %v703 = vpack.c.b16 %v485, %v483
    %v704 = vpack.c.b16 %v486, %v484
    %v705 = vpack.c.b16 %v489, %v487
    %v706 = vpack.c.b16 %v490, %v488
    %v707 = vpack.c.b16 %v493, %v491
    %v708 = vpack.c.b16 %v494, %v492
    %v709 = vpack.c.b16 %v497, %v495
    %v710 = vpack.c.b16 %v498, %v496
    %v711 = vpack.c.b16 %v501, %v499
    %v712 = vpack.c.b16 %v502, %v500
    %v713 = vpack.c.b16 %v505, %v503
    %v714 = vpack.c.b16 %v506, %v504
    %v715 = vpack.c.b16 %v509, %v507
    %v716 = vpack.c.b16 %v510, %v508
    %v717 = vpack.c.b16 %v513, %v511
    %v718 = vpack.c.b16 %v514, %v512
    %v719 = vpack.c.b16 %v517, %v515
    %v720 = vpack.c.b16 %v518, %v516
    %v721 = vpack.c.b16 %v521, %v519
    %v722 = vpack.c.b16 %v522, %v520
    %v723 = vpack.c.b16 %v525, %v523
    %v724 = vpack.c.b16 %v526, %v524
    %v725 = vpack.c.b16 %v529, %v527
    %v726 = vpack.c.b16 %v530, %v528
    %v727 = vpack.c.b16 %v533, %v531
    %v728 = vpack.c.b16 %v534, %v532
    %v729 = vpack.c.b16 %v537, %v535
    %v730 = vpack.c.b16 %v538, %v536
    %v731 = vpack.c.b16 %v541, %v539
    %v732 = vpack.c.b16 %v542, %v540
    %v733 = vpack.c.b16 %v545, %v543
    %v734 = vpack.c.b16 %v546, %v544
    %v735 = vpack.c.b16 %v549, %v547
    %v736 = vpack.c.b16 %v550, %v548
    %v737 = vpack.c.b16 %v553, %v551
    %v738 = vpack.c.b16 %v554, %v552
    %v739 = vpack.c.b16 %v557, %v555
    %v740 = vpack.c.b16 %v558, %v556
    %v741 = vpack.c.b16 %v561, %v559
    %v742 = vpack.c.b16 %v562, %v560
    %v743 = vpack.c.b16 %v565, %v563
    %v744 = vpack.c.b16 %v566, %v564
    %v745 = vpack.c.b16 %v569, %v567
    %v746 = vpack.c.b16 %v570, %v568
    %v747 = vpack.c.b16 %v573, %v571
    %v748 = vpack.c.b16 %v574, %v572
    %v749 = vpack.c.b16 %v577, %v575
    %v750 = vpack.c.b16 %v578, %v576
    %v751 = vpack.c.b16 %v581, %v579
    %v752 = vpack.c.b16 %v582, %v580
    %v753 = vpack.c.b16 %v585, %v583
    %v754 = vpack.c.b16 %v586, %v584
    %v755 = vpack.c.b16 %v589, %v587
    %v756 = vpack.c.b16 %v590, %v588
    %v757 = vpack.c.b16 %v593, %v591
    %v758 = vpack.c.b16 %v594, %v592
    %v759 = vpack.c.b16 %v597, %v595
    %v760 = vpack.c.b16 %v598, %v596
    %v761 = vpack.c.b16 %v601, %v599
    %v762 = vpack.c.b16 %v602, %v600
    %v763 = vpack.c.b16 %v605, %v603
    %v764 = vpack.c.b16 %v606, %v604
    %v765 = vpack.c.b16 %v609, %v607
    %v766 = vpack.c.b16 %v610, %v608
    %v767 = vpack.c.b16 %v613, %v611
    %v768 = vpack.c.b16 %v614, %v612
    %v769 = vpack.c.b16 %v617, %v615
    %v770 = vpack.c.b16 %v618, %v616
    %v771 = vpack.c.b16 %v621, %v619
    %v772 = vpack.c.b16 %v622, %v620
    %v773 = vpack.c.b16 %v625, %v623
    %v774 = vpack.c.b16 %v626, %v624
    %v775 = vpack.c.b16 %v629, %v627
    %v776 = vpack.c.b16 %v630, %v628
    %v777 = vpack.c.b16 %v633, %v631
    %v778 = vpack.c.b16 %v634, %v632
    %v779 = vpack.c.b16 %v637, %v635
    %v780 = vpack.c.b16 %v638, %v636
    %v781 = vpack.c.b16 %v641, %v639
    %v782 = vpack.c.b16 %v642, %v640
    %v783 = vpack.c.b16 %v645, %v643
    %v784 = vpack.c.b16 %v646, %v644
    %v785 = vpack.c.b16 %v649, %v647
    %v786 = vpack.c.b16 %v650, %v648
    %v787 = vpack.c.b16 %v653, %v651
    %v788 = vpack.c.b16 %v654, %v652
    %v789 = vpack.c.b16 %v657, %v655
    %v790 = vpack.c.b16 %v658, %v656
    %v791 = vpack.c.b16 %v661, %v659
    %v792 = vpack.c.b16 %v662, %v660
    %v793 = vpack.c.b16 %v665, %v663
    %v794 = vpack.c.b16 %v666, %v664
    %v795 = vpack.c.b16 %v669, %v667
    %v796 = vpack.c.b16 %v670, %v668
    %v797 = vpack.c.b16 %v673, %v671
    %v798 = vpack.c.b16 %v674, %v672
    %v799 = vpack.c.b16 %v677, %v675
    %v800 = vpack.c.b16 %v678, %v676
    %v801 = vpack.c.b16 %v681, %v679
    %v802 = vpack.c.b16 %v682, %v680
    %v803 = vpack.c.b16 %v685, %v683
    %v804 = vpack.c.b16 %v686, %v684
    %v805 = vpack.c.b16 %v689, %v687
    %v806 = vpack.c.b16 %v690, %v688
    %v807 = vpack.c.b16 %v693, %v691
    %v808 = vpack.c.b16 %v694, %v692
    %v809 = vpack.c.b16 %v697, %v695
    %v810 = vpack.c.b16 %v698, %v696
    %923 = vmatprep.subr.bf16.mxu0 %v700
    %924 = vmatpush1.bf16.msra.mxu0 %v699
    %925 = vmatprep.subr.bf16.mxu0 %v702
    %926 = vmatpush1.bf16.msra.mxu0 %v701
    %927 = vmatprep.subr.bf16.mxu0 %v704
    %928 = vmatpush1.bf16.msra.mxu0 %v703
    %929 = vmatprep.subr.bf16.mxu0 %v706
    %930 = vmatpush1.bf16.msra.mxu0 %v705
    %931 = vmatprep.subr.bf16.mxu0 %v708
    %932 = vmatpush1.bf16.msra.mxu0 %v707
    %933 = vmatprep.subr.bf16.mxu0 %v710
    %934 = vmatpush1.bf16.msra.mxu0 %v709
    %935 = vmatprep.subr.bf16.mxu0 %v712
    %936 = vmatpush1.bf16.msra.mxu0 %v711
    %937 = vmatprep.subr.bf16.mxu0 %v714
    %938 = vmatpush1.bf16.msra.mxu0 %v713
    %939 = vmatprep.subr.bf16.mxu0 %v716
    %940 = vmatpush1.bf16.msra.mxu0 %v715
    %941 = vmatprep.subr.bf16.mxu0 %v718
    %942 = vmatpush1.bf16.msra.mxu0 %v717
    %943 = vmatprep.subr.bf16.mxu0 %v720
    %944 = vmatpush1.bf16.msra.mxu0 %v719
    %945 = vmatprep.subr.bf16.mxu0 %v722
    %946 = vmatpush1.bf16.msra.mxu0 %v721
    %947 = vmatprep.subr.bf16.mxu0 %v724
    %948 = vmatpush1.bf16.msra.mxu0 %v723
    %949 = vmatprep.subr.bf16.mxu0 %v726
    %950 = vmatpush1.bf16.msra.mxu0 %v725
    %951 = vmatprep.subr.bf16.mxu0 %v728
    %952 = vmatpush1.bf16.msra.mxu0 %v727
    %953 = vmatprep.subr.bf16.mxu0 %v730
    %954 = vmatpush1.bf16.msra.mxu0 %v729
    %955 = vmatprep.mubr.bf16.mxu0 %v308
    %956 = vmatmul.mubr.bf16.gmra.mrb[0].mxu0 %v307
    %v957 = vpop.f32.mrb[0].mxu0
    %v958 = vadd.f32 %v212, %v957
    %v959 = vpop.f32.mrb[0].mxu0
    %v960 = vadd.f32 %v216, %v959
    %v961 = vpop.f32.mrb[0].mxu0
    %v962 = vadd.f32 %v212, %v961
    %v963 = vpop.f32.mrb[0].mxu0
    %v964 = vadd.f32 %v216, %v963
    %965 = vmatprep.mubr.bf16.mxu0 %v315
    %966 = vmatmul.mubr.bf16.gmra.mrb[0].mxu0 %v314
    %v967 = vpop.f32.mrb[0].mxu0
    %v968 = vadd.f32 %v212, %v967
    %v969 = vpop.f32.mrb[0].mxu0
    %v970 = vadd.f32 %v216, %v969
    %v971 = vpop.f32.mrb[0].mxu0
    %v972 = vadd.f32 %v212, %v971
    %v973 = vpop.f32.mrb[0].mxu0
    %v974 = vadd.f32 %v216, %v973
    %975 = vmatprep.mubr.bf16.mxu0 %v322
    %976 = vmatmul.mubr.bf16.gmra.mrb[0].mxu0 %v321
    %v977 = vpop.f32.mrb[0].mxu0
    %v978 = vadd.f32 %v212, %v977
    %v979 = vpop.f32.mrb[0].mxu0
    %v980 = vadd.f32 %v216, %v979
    %v981 = vpop.f32.mrb[0].mxu0
    %v982 = vadd.f32 %v212, %v981
    %v983 = vpop.f32.mrb[0].mxu0
    %v984 = vadd.f32 %v216, %v983
    %985 = vmatprep.mubr.bf16.mxu0 %v329
    %986 = vmatmul.mubr.bf16.gmra.mrb[0].mxu0 %v328
    %v987 = vpop.f32.mrb[0].mxu0
    %v988 = vadd.f32 %v212, %v987
    %v989 = vpop.f32.mrb[0].mxu0
    %v990 = vadd.f32 %v216, %v989
    %v991 = vpop.f32.mrb[0].mxu0
    %v992 = vadd.f32 %v212, %v991
    %v993 = vpop.f32.mrb[0].mxu0
    %v994 = vadd.f32 %v216, %v993
    %995 = vdwg.mxu0
    %996 = vmatprep.subr.bf16.mxu0 %v732
    %997 = vmatpush1.bf16.msra.mxu0 %v731
    %998 = vmatprep.subr.bf16.mxu0 %v734
    %999 = vmatpush1.bf16.msra.mxu0 %v733
    %1000 = vmatprep.subr.bf16.mxu0 %v736
    %1001 = vmatpush1.bf16.msra.mxu0 %v735
    %1002 = vmatprep.subr.bf16.mxu0 %v738
    %1003 = vmatpush1.bf16.msra.mxu0 %v737
    %1004 = vmatprep.subr.bf16.mxu0 %v740
    %1005 = vmatpush1.bf16.msra.mxu0 %v739
    %1006 = vmatprep.subr.bf16.mxu0 %v742
    %1007 = vmatpush1.bf16.msra.mxu0 %v741
    %1008 = vmatprep.subr.bf16.mxu0 %v744
    %1009 = vmatpush1.bf16.msra.mxu0 %v743
    %1010 = vmatprep.subr.bf16.mxu0 %v746
    %1011 = vmatpush1.bf16.msra.mxu0 %v745
    %1012 = vmatprep.subr.bf16.mxu0 %v748
    %1013 = vmatpush1.bf16.msra.mxu0 %v747
    %1014 = vmatprep.subr.bf16.mxu0 %v750
    %1015 = vmatpush1.bf16.msra.mxu0 %v749
    %1016 = vmatprep.subr.bf16.mxu0 %v752
    %1017 = vmatpush1.bf16.msra.mxu0 %v751
    %1018 = vmatprep.subr.bf16.mxu0 %v754
    %1019 = vmatpush1.bf16.msra.mxu0 %v753
    %1020 = vmatprep.subr.bf16.mxu0 %v756
    %1021 = vmatpush1.bf16.msra.mxu0 %v755
    %1022 = vmatprep.subr.bf16.mxu0 %v758
    %1023 = vmatpush1.bf16.msra.mxu0 %v757
    %1024 = vmatprep.subr.bf16.mxu0 %v760
    %1025 = vmatpush1.bf16.msra.mxu0 %v759
    %1026 = vmatprep.subr.bf16.mxu0 %v762
    %1027 = vmatpush1.bf16.msra.mxu0 %v761
    %1028 = vmatprep.mubr.bf16.mxu0 %v310
    %1029 = vmatmul.mubr.bf16.gmra.mrb[0].mxu0 %v309
    %v1030 = vpop.f32.mrb[0].mxu0
    %v1031 = vadd.f32 %v958, %v1030
    %v1032 = vpop.f32.mrb[0].mxu0
    %v1033 = vadd.f32 %v960, %v1032
    %v1034 = vpop.f32.mrb[0].mxu0
    %v1035 = vadd.f32 %v962, %v1034
    %v1036 = vpop.f32.mrb[0].mxu0
    %v1037 = vadd.f32 %v964, %v1036
    %1038 = vmatprep.mubr.bf16.mxu0 %v317
    %1039 = vmatmul.mubr.bf16.gmra.mrb[0].mxu0 %v316
    %v1040 = vpop.f32.mrb[0].mxu0
    %v1041 = vadd.f32 %v968, %v1040
    %v1042 = vpop.f32.mrb[0].mxu0
    %v1043 = vadd.f32 %v970, %v1042
    %v1044 = vpop.f32.mrb[0].mxu0
    %v1045 = vadd.f32 %v972, %v1044
    %v1046 = vpop.f32.mrb[0].mxu0
    %v1047 = vadd.f32 %v974, %v1046
    %1048 = vmatprep.mubr.bf16.mxu0 %v324
    %1049 = vmatmul.mubr.bf16.gmra.mrb[0].mxu0 %v323
    %v1050 = vpop.f32.mrb[0].mxu0
    %v1051 = vadd.f32 %v978, %v1050
    %v1052 = vpop.f32.mrb[0].mxu0
    %v1053 = vadd.f32 %v980, %v1052
    %v1054 = vpop.f32.mrb[0].mxu0
    %v1055 = vadd.f32 %v982, %v1054
    %v1056 = vpop.f32.mrb[0].mxu0
    %v1057 = vadd.f32 %v984, %v1056
    %1058 = vmatprep.mubr.bf16.mxu0 %v331
    %1059 = vmatmul.mubr.bf16.gmra.mrb[0].mxu0 %v330
    %v1060 = vpop.f32.mrb[0].mxu0
    %v1061 = vadd.f32 %v988, %v1060
    %v1062 = vpop.f32.mrb[0].mxu0
    %v1063 = vadd.f32 %v990, %v1062
    %v1064 = vpop.f32.mrb[0].mxu0
    %v1065 = vadd.f32 %v992, %v1064
    %v1066 = vpop.f32.mrb[0].mxu0
    %v1067 = vadd.f32 %v994, %v1066
    %1068 = vdwg.mxu0
    %1069 = vmatprep.subr.bf16.mxu0 %v764
    %1070 = vmatpush1.bf16.msra.mxu0 %v763
    %1071 = vmatprep.subr.bf16.mxu0 %v766
    %1072 = vmatpush1.bf16.msra.mxu0 %v765
    %1073 = vmatprep.subr.bf16.mxu0 %v768
    %1074 = vmatpush1.bf16.msra.mxu0 %v767
    %1075 = vmatprep.subr.bf16.mxu0 %v770
    %1076 = vmatpush1.bf16.msra.mxu0 %v769
    %1077 = vmatprep.subr.bf16.mxu0 %v772
    %1078 = vmatpush1.bf16.msra.mxu0 %v771
    %1079 = vmatprep.subr.bf16.mxu0 %v774
    %1080 = vmatpush1.bf16.msra.mxu0 %v773
    %1081 = vmatprep.subr.bf16.mxu0 %v776
    %1082 = vmatpush1.bf16.msra.mxu0 %v775
    %1083 = vmatprep.subr.bf16.mxu0 %v778
    %1084 = vmatpush1.bf16.msra.mxu0 %v777
    %1085 = vmatprep.subr.bf16.mxu0 %v780
    %1086 = vmatpush1.bf16.msra.mxu0 %v779
    %1087 = vmatprep.subr.bf16.mxu0 %v782
    %1088 = vmatpush1.bf16.msra.mxu0 %v781
    %1089 = vmatprep.subr.bf16.mxu0 %v784
    %1090 = vmatpush1.bf16.msra.mxu0 %v783
    %1091 = vmatprep.subr.bf16.mxu0 %v786
    %1092 = vmatpush1.bf16.msra.mxu0 %v785
    %1093 = vmatprep.subr.bf16.mxu0 %v788
    %1094 = vmatpush1.bf16.msra.mxu0 %v787
    %1095 = vmatprep.subr.bf16.mxu0 %v790
    %1096 = vmatpush1.bf16.msra.mxu0 %v789
    %1097 = vmatprep.subr.bf16.mxu0 %v792
    %1098 = vmatpush1.bf16.msra.mxu0 %v791
    %1099 = vmatprep.subr.bf16.mxu0 %v794
    %1100 = vmatpush1.bf16.msra.mxu0 %v793
    %1101 = vmatprep.mubr.bf16.mxu0 %v312
    %1102 = vmatmul.mubr.bf16.gmra.mrb[0].mxu0 %v311
    %v1103 = vpop.f32.mrb[0].mxu0
    %v1104 = vadd.f32 %v1031, %v1103
    %v1105 = vpop.f32.mrb[0].mxu0
    %v1106 = vadd.f32 %v1033, %v1105
    %v1107 = vpop.f32.mrb[0].mxu0
    %v1108 = vadd.f32 %v1035, %v1107
    %v1109 = vpop.f32.mrb[0].mxu0
    %v1110 = vadd.f32 %v1037, %v1109
    %1111 = vmatprep.mubr.bf16.mxu0 %v319
    %1112 = vmatmul.mubr.bf16.gmra.mrb[0].mxu0 %v318
    %v1113 = vpop.f32.mrb[0].mxu0
    %v1114 = vadd.f32 %v1041, %v1113
    %v1115 = vpop.f32.mrb[0].mxu0
    %v1116 = vadd.f32 %v1043, %v1115
    %v1117 = vpop.f32.mrb[0].mxu0
    %v1118 = vadd.f32 %v1045, %v1117
    %v1119 = vpop.f32.mrb[0].mxu0
    %v1120 = vadd.f32 %v1047, %v1119
    %1121 = vmatprep.mubr.bf16.mxu0 %v326
    %1122 = vmatmul.mubr.bf16.gmra.mrb[0].mxu0 %v325
    %v1123 = vpop.f32.mrb[0].mxu0
    %v1124 = vadd.f32 %v1051, %v1123
    %v1125 = vpop.f32.mrb[0].mxu0
    %v1126 = vadd.f32 %v1053, %v1125
    %v1127 = vpop.f32.mrb[0].mxu0
    %v1128 = vadd.f32 %v1055, %v1127
    %v1129 = vpop.f32.mrb[0].mxu0
    %v1130 = vadd.f32 %v1057, %v1129
    %1131 = vmatprep.mubr.bf16.mxu0 %v333
    %1132 = vmatmul.mubr.bf16.gmra.mrb[0].mxu0 %v332
    %v1133 = vpop.f32.mrb[0].mxu0
    %v1134 = vadd.f32 %v1061, %v1133
    %v1135 = vpop.f32.mrb[0].mxu0
    %v1136 = vadd.f32 %v1063, %v1135
    %v1137 = vpop.f32.mrb[0].mxu0
    %v1138 = vadd.f32 %v1065, %v1137
    %v1139 = vpop.f32.mrb[0].mxu0
    %v1140 = vadd.f32 %v1067, %v1139
    %1141 = vdwg.mxu0
    %1142 = vmatprep.subr.bf16.mxu0 %v796
    %1143 = vmatpush1.bf16.msra.mxu0 %v795
    %1144 = vmatprep.subr.bf16.mxu0 %v798
    %1145 = vmatpush1.bf16.msra.mxu0 %v797
    %1146 = vmatprep.subr.bf16.mxu0 %v800
    %1147 = vmatpush1.bf16.msra.mxu0 %v799
    %1148 = vmatprep.subr.bf16.mxu0 %v802
    %1149 = vmatpush1.bf16.msra.mxu0 %v801
    %1150 = vmatprep.subr.bf16.mxu0 %v804
    %1151 = vmatpush1.bf16.msra.mxu0 %v803
    %1152 = vmatprep.subr.bf16.mxu0 %v806
    %1153 = vmatpush1.bf16.msra.mxu0 %v805
    %1154 = vmatprep.subr.bf16.mxu0 %v808
    %1155 = vmatpush1.bf16.msra.mxu0 %v807
    %1156 = vmatprep.subr.bf16.mxu0 %v810
    %1157 = vmatpush1.bf16.msra.mxu0 %v809
    %1158 = vmatprep.subr.bf16.mxu0 0
    %1159 = vmatpush1.bf16.msra.mxu0 0
    %1160 = vmatprep.subr.bf16.mxu0 0
    %1161 = vmatpush1.bf16.msra.mxu0 0
    %1162 = vmatprep.subr.bf16.mxu0 0
    %1163 = vmatpush1.bf16.msra.mxu0 0
    %1164 = vmatprep.subr.bf16.mxu0 0
    %1165 = vmatpush1.bf16.msra.mxu0 0
    %1166 = vmatprep.subr.bf16.mxu0 0
    %1167 = vmatpush1.bf16.msra.mxu0 0
    %1168 = vmatprep.subr.bf16.mxu0 0
    %1169 = vmatpush1.bf16.msra.mxu0 0
    %1170 = vmatprep.subr.bf16.mxu0 0
    %1171 = vmatpush1.bf16.msra.mxu0 0
    %1172 = vmatprep.subr.bf16.mxu0 0
    %1173 = vmatpush1.bf16.msra.mxu0 0
    %1174 = vmatprep.mubr.bf16.mxu0 0
    %1175 = vmatmul.mubr.bf16.gmra.mrb[0].mxu0 %v313
    %v1176 = vpop.f32.mrb[0].mxu0
    %v1177 = vadd.f32 %v1104, %v1176
    %v1178 = vpop.f32.mrb[0].mxu0
    %v1179 = vadd.f32 %v1106, %v1178
    %v1180 = vpop.f32.mrb[0].mxu0
    %v1181 = vadd.f32 %v1108, %v1180
    %v1182 = vpop.f32.mrb[0].mxu0
    %v1183 = vadd.f32 %v1110, %v1182
    %1184 = vmatprep.mubr.bf16.mxu0 0
    %1185 = vmatmul.mubr.bf16.gmra.mrb[0].mxu0 %v320
    %v1186 = vpop.f32.mrb[0].mxu0
    %v1187 = vadd.f32 %v1114, %v1186
    %v1188 = vpop.f32.mrb[0].mxu0
    %v1189 = vadd.f32 %v1116, %v1188
    %v1190 = vpop.f32.mrb[0].mxu0
    %v1191 = vadd.f32 %v1118, %v1190
    %v1192 = vpop.f32.mrb[0].mxu0
    %v1193 = vadd.f32 %v1120, %v1192
    %1194 = vmatprep.mubr.bf16.mxu0 0
    %1195 = vmatmul.mubr.bf16.gmra.mrb[0].mxu0 %v327
    %v1196 = vpop.f32.mrb[0].mxu0
    %v1197 = vadd.f32 %v1124, %v1196
    %v1198 = vpop.f32.mrb[0].mxu0
    %v1199 = vadd.f32 %v1126, %v1198
    %v1200 = vpop.f32.mrb[0].mxu0
    %v1201 = vadd.f32 %v1128, %v1200
    %v1202 = vpop.f32.mrb[0].mxu0
    %v1203 = vadd.f32 %v1130, %v1202
    %1204 = vmatprep.mubr.bf16.mxu0 0
    %1205 = vmatmul.mubr.bf16.gmra.mrb[0].mxu0 %v334
    %v1206 = vpop.f32.mrb[0].mxu0
    %v1207 = vadd.f32 %v1134, %v1206
    %v1208 = vpop.f32.mrb[0].mxu0
    %v1209 = vadd.f32 %v1136, %v1208
    %v1210 = vpop.f32.mrb[0].mxu0
    %v1211 = vadd.f32 %v1138, %v1210
    %v1212 = vpop.f32.mrb[0].mxu0
    %v1213 = vadd.f32 %v1140, %v1212
    %1214 = vdwg.mxu0
    %vm1215 = vcmp.gt.f32.partialorder %v1177, 0.0
    %vm1216 = vcmp.gt.f32.partialorder %v1179, 0.0
    %vm1217 = vcmp.gt.f32.partialorder %v1181, 0.0
    %vm1218 = vcmp.gt.f32.partialorder %v1183, 0.0
    %vm1219 = vcmp.gt.f32.partialorder %v1187, 0.0
    %vm1220 = vcmp.gt.f32.partialorder %v1189, 0.0
    %vm1221 = vcmp.gt.f32.partialorder %v1191, 0.0
    %vm1222 = vcmp.gt.f32.partialorder %v1193, 0.0
    %vm1223 = vcmp.gt.f32.partialorder %v1197, 0.0
    %vm1224 = vcmp.gt.f32.partialorder %v1199, 0.0
    %vm1225 = vcmp.gt.f32.partialorder %v1201, 0.0
    %vm1226 = vcmp.gt.f32.partialorder %v1203, 0.0
    %vm1227 = vcmp.gt.f32.partialorder %v1207, 0.0
    %vm1228 = vcmp.gt.f32.partialorder %v1209, 0.0
    %vm1229 = vcmp.gt.f32.partialorder %v1211, 0.0
    %vm1230 = vcmp.gt.f32.partialorder %v1213, 0.0
    %v1231 = vmul.f32 %v1177, 0.2
    %v1232 = vmul.f32 %v1179, 0.2
    %v1233 = vmul.f32 %v1181, 0.2
    %v1234 = vmul.f32 %v1183, 0.2
    %v1235 = vmul.f32 %v1187, 0.2
    %v1236 = vmul.f32 %v1189, 0.2
    %v1237 = vmul.f32 %v1191, 0.2
    %v1238 = vmul.f32 %v1193, 0.2
    %v1239 = vmul.f32 %v1197, 0.2
    %v1240 = vmul.f32 %v1199, 0.2
    %v1241 = vmul.f32 %v1201, 0.2
    %v1242 = vmul.f32 %v1203, 0.2
    %v1243 = vmul.f32 %v1207, 0.2
    %v1244 = vmul.f32 %v1209, 0.2
    %v1245 = vmul.f32 %v1211, 0.2
    %v1246 = vmul.f32 %v1213, 0.2
    %v1247 = vsel %vm1215, %v1177, %v1231
    %v1248 = vsel %vm1216, %v1179, %v1232
    %v1249 = vsel %vm1217, %v1181, %v1233
    %v1250 = vsel %vm1218, %v1183, %v1234
    %v1251 = vsel %vm1219, %v1187, %v1235
    %v1252 = vsel %vm1220, %v1189, %v1236
    %v1253 = vsel %vm1221, %v1191, %v1237
    %v1254 = vsel %vm1222, %v1193, %v1238
    %v1255 = vsel %vm1223, %v1197, %v1239
    %v1256 = vsel %vm1224, %v1199, %v1240
    %v1257 = vsel %vm1225, %v1201, %v1241
    %v1258 = vsel %vm1226, %v1203, %v1242
    %v1259 = vsel %vm1227, %v1207, %v1243
    %v1260 = vsel %vm1228, %v1209, %v1244
    %v1261 = vsel %vm1229, %v1211, %v1245
    %v1262 = vsel %vm1230, %v1213, %v1246
    %v1263 = vpack.c.bf16 %v1249, %v1247
    %v1264 = vpack.c.bf16 %v1250, %v1248
    %v1265 = vpack.c.bf16 %v1253, %v1251
    %v1266 = vpack.c.bf16 %v1254, %v1252
    %v1267 = vpack.c.bf16 %v1257, %v1255
    %v1268 = vpack.c.bf16 %v1258, %v1256
    %v1269 = vpack.c.bf16 %v1261, %v1259
    %v1270 = vpack.c.bf16 %v1262, %v1260
    %v1271 = vld [vmem:[#allocation7] sm:$0xf]
    %v1272 = vld [vmem:[#allocation7 + $0x4] sm:$0xf]
    %v1273 = vld [vmem:[#allocation7 + $0x8] sm:$0xf]
    %v1274 = vld [vmem:[#allocation7 + $0xc] sm:$0xf]
    %v1275 = vld [vmem:[#allocation7 + $0x10] sm:$0xf]
    %v1276 = vld [vmem:[#allocation7 + $0x14] sm:$0xf]
    %v1277 = vld [vmem:[#allocation7 + $0x18] sm:$0xf]
    %v1278 = vld [vmem:[#allocation7 + $0x1c] sm:$0xf]
    %v1279 = vld [vmem:[#allocation7 + $0x20] sm:$0xf]
    %v1280 = vld [vmem:[#allocation7 + $0x24] sm:$0xf]
    %v1281 = vld [vmem:[#allocation7 + $0x28] sm:$0xf]
    %v1282 = vld [vmem:[#allocation7 + $0x2c] sm:$0xf]
    %v1283 = vld [vmem:[#allocation7 + $0x30] sm:$0xf]
    %v1284 = vld [vmem:[#allocation7 + $0x34] sm:$0xf]
    %v1285 = vld [vmem:[#allocation7 + $0x38] sm:$0xf]
    %v1286 = vld [vmem:[#allocation7 + $0x3c] sm:$0xf]
    %v1287 = vld [vmem:[#allocation7 + $0x40] sm:$0xf]
    %v1288 = vld [vmem:[#allocation7 + $0x44] sm:$0xf]
    %v1289 = vld [vmem:[#allocation7 + $0x48] sm:$0xf]
    %v1290 = vld [vmem:[#allocation7 + $0x4c] sm:$0xf]
    %v1291 = vld [vmem:[#allocation7 + $0x50] sm:$0xf]
    %v1292 = vld [vmem:[#allocation7 + $0x54] sm:$0xf]
    %v1293 = vld [vmem:[#allocation7 + $0x58] sm:$0xf]
    %v1294 = vld [vmem:[#allocation7 + $0x5c] sm:$0xf]
    %v1295 = vld [vmem:[#allocation7 + $0x60] sm:$0xf]
    %v1296 = vld [vmem:[#allocation7 + $0x64] sm:$0xf]
    %v1297 = vld [vmem:[#allocation7 + $0x68] sm:$0xf]
    %v1298 = vld [vmem:[#allocation7 + $0x6c] sm:$0xf]
    %v1299 = vld [vmem:[#allocation7 + $0x70] sm:$0xf]
    %v1300 = vld [vmem:[#allocation7 + $0x74] sm:$0xf]
    %v1301 = vld [vmem:[#allocation7 + $0x78] sm:$0xf]
    %v1302 = vld [vmem:[#allocation7 + $0x7c] sm:$0xf]
    %v1303 = vld [vmem:[%s4] sm:$0x1]
    %v1305 = vlaneseq
    %v1306 = vshrl.u32 %v1305, 7
    %v1307 = vsub.s32 0, %v1306
    %v1308 = vrot.slane %v1303, %v1307
    %v1342 = vunpack.c.l.b16 %v1271
    %v1343 = vunpack.c.l.b16 %v1272
    %v1344 = vunpack.c.l.b16 %v1273
    %v1345 = vunpack.c.l.b16 %v1274
    %v1346 = vunpack.c.l.b16 %v1275
    %v1347 = vunpack.c.l.b16 %v1276
    %v1348 = vunpack.c.l.b16 %v1277
    %v1349 = vunpack.c.l.b16 %v1278
    %v1350 = vunpack.c.l.b16 %v1279
    %v1351 = vunpack.c.l.b16 %v1280
    %v1352 = vunpack.c.l.b16 %v1281
    %v1353 = vunpack.c.l.b16 %v1282
    %v1354 = vunpack.c.l.b16 %v1283
    %v1355 = vunpack.c.l.b16 %v1284
    %v1356 = vunpack.c.l.b16 %v1285
    %v1357 = vunpack.c.l.b16 %v1286
    %v1358 = vunpack.c.l.b16 %v1287
    %v1359 = vunpack.c.l.b16 %v1288
    %v1360 = vunpack.c.l.b16 %v1289
    %v1361 = vunpack.c.l.b16 %v1290
    %v1362 = vunpack.c.l.b16 %v1291
    %v1363 = vunpack.c.l.b16 %v1292
    %v1364 = vunpack.c.l.b16 %v1293
    %v1365 = vunpack.c.l.b16 %v1294
    %v1366 = vunpack.c.l.b16 %v1295
    %v1367 = vunpack.c.l.b16 %v1296
    %v1368 = vunpack.c.l.b16 %v1297
    %v1369 = vunpack.c.l.b16 %v1298
    %v1370 = vunpack.c.l.b16 %v1299
    %v1371 = vunpack.c.l.b16 %v1300
    %v1372 = vunpack.c.l.b16 %v1301
    %v1373 = vunpack.c.l.b16 %v1302
    %v1374 = vpack.c.b16 %v1343, %v1342
    %v1375 = vpack.c.b16 %v1345, %v1344
    %v1376 = vpack.c.b16 %v1347, %v1346
    %v1377 = vpack.c.b16 %v1349, %v1348
    %v1378 = vpack.c.b16 %v1351, %v1350
    %v1379 = vpack.c.b16 %v1353, %v1352
    %v1380 = vpack.c.b16 %v1355, %v1354
    %v1381 = vpack.c.b16 %v1357, %v1356
    %v1382 = vpack.c.b16 %v1359, %v1358
    %v1383 = vpack.c.b16 %v1361, %v1360
    %v1384 = vpack.c.b16 %v1363, %v1362
    %v1385 = vpack.c.b16 %v1365, %v1364
    %v1386 = vpack.c.b16 %v1367, %v1366
    %v1387 = vpack.c.b16 %v1369, %v1368
    %v1388 = vpack.c.b16 %v1371, %v1370
    %v1389 = vpack.c.b16 %v1373, %v1372
    %1406 = vmatprep.subr.bf16.mxu0 0
    %1407 = vmatpush1.bf16.msra.mxu0 %v1374
    %1408 = vmatprep.subr.bf16.mxu0 0
    %1409 = vmatpush1.bf16.msra.mxu0 %v1375
    %1410 = vmatprep.subr.bf16.mxu0 0
    %1411 = vmatpush1.bf16.msra.mxu0 %v1376
    %1412 = vmatprep.subr.bf16.mxu0 0
    %1413 = vmatpush1.bf16.msra.mxu0 %v1377
    %1414 = vmatprep.subr.bf16.mxu0 0
    %1415 = vmatpush1.bf16.msra.mxu0 %v1378
    %1416 = vmatprep.subr.bf16.mxu0 0
    %1417 = vmatpush1.bf16.msra.mxu0 %v1379
    %1418 = vmatprep.subr.bf16.mxu0 0
    %1419 = vmatpush1.bf16.msra.mxu0 %v1380
    %1420 = vmatprep.subr.bf16.mxu0 0
    %1421 = vmatpush1.bf16.msra.mxu0 %v1381
    %1422 = vmatprep.subr.bf16.mxu0 0
    %1423 = vmatpush1.bf16.msra.mxu0 %v1382
    %1424 = vmatprep.subr.bf16.mxu0 0
    %1425 = vmatpush1.bf16.msra.mxu0 %v1383
    %1426 = vmatprep.subr.bf16.mxu0 0
    %1427 = vmatpush1.bf16.msra.mxu0 %v1384
    %1428 = vmatprep.subr.bf16.mxu0 0
    %1429 = vmatpush1.bf16.msra.mxu0 %v1385
    %1430 = vmatprep.subr.bf16.mxu0 0
    %1431 = vmatpush1.bf16.msra.mxu0 %v1386
    %1432 = vmatprep.subr.bf16.mxu0 0
    %1433 = vmatpush1.bf16.msra.mxu0 %v1387
    %1434 = vmatprep.subr.bf16.mxu0 0
    %1435 = vmatpush1.bf16.msra.mxu0 %v1388
    %1436 = vmatprep.subr.bf16.mxu0 0
    %1437 = vmatpush1.bf16.msra.mxu0 %v1389
    %1438 = vmatprep.mubr.bf16.mxu0 %v1264
    %1439 = vmatmul.mubr.bf16.gmra.mrb[0].mxu0 %v1263
    %v1440 = vpop.f32.mrb[0].mxu0
    %v1441 = vadd.f32 %v1308, %v1440
    %v1442 = vpop.f32.mrb[0].mxu0
    %v1443 = vpop.f32.mrb[0].mxu0
    %v1444 = vadd.f32 %v1308, %v1443
    %v1445 = vpop.f32.mrb[0].mxu0
    %1446 = vmatprep.mubr.bf16.mxu0 %v1266
    %1447 = vmatmul.mubr.bf16.gmra.mrb[0].mxu0 %v1265
    %v1448 = vpop.f32.mrb[0].mxu0
    %v1449 = vadd.f32 %v1308, %v1448
    %v1450 = vpop.f32.mrb[0].mxu0
    %v1451 = vpop.f32.mrb[0].mxu0
    %v1452 = vadd.f32 %v1308, %v1451
    %v1453 = vpop.f32.mrb[0].mxu0
    %1454 = vmatprep.mubr.bf16.mxu0 %v1268
    %1455 = vmatmul.mubr.bf16.gmra.mrb[0].mxu0 %v1267
    %v1456 = vpop.f32.mrb[0].mxu0
    %v1457 = vadd.f32 %v1308, %v1456
    %v1458 = vpop.f32.mrb[0].mxu0
    %v1459 = vpop.f32.mrb[0].mxu0
    %v1460 = vadd.f32 %v1308, %v1459
    %v1461 = vpop.f32.mrb[0].mxu0
    %1462 = vmatprep.mubr.bf16.mxu0 %v1270
    %1463 = vmatmul.mubr.bf16.gmra.mrb[0].mxu0 %v1269
    %v1464 = vpop.f32.mrb[0].mxu0
    %v1465 = vadd.f32 %v1308, %v1464
    %v1466 = vpop.f32.mrb[0].mxu0
    %v1467 = vpop.f32.mrb[0].mxu0
    %v1468 = vadd.f32 %v1308, %v1467
    %v1469 = vpop.f32.mrb[0].mxu0
    %1470 = vdwg.mxu0
    %v1471 = vsub.f32 0.0, %v1441
    %v1472 = vsub.f32 0.0, %v1444
    %v1473 = vsub.f32 0.0, %v1449
    %v1474 = vsub.f32 0.0, %v1452
    %v1475 = vsub.f32 0.0, %v1457
    %v1476 = vsub.f32 0.0, %v1460
    %v1477 = vsub.f32 0.0, %v1465
    %v1478 = vsub.f32 0.0, %v1468
    %v1479 = vmul.f32 %v1471, 1.442695
    %v1480 = vpow.pop %v1479
    %v1481 = vmul.f32 %v1472, 1.442695
    %v1482 = vpow.pop %v1481
    %v1483 = vmul.f32 %v1473, 1.442695
    %v1484 = vpow.pop %v1483
    %v1485 = vmul.f32 %v1474, 1.442695
    %v1486 = vpow.pop %v1485
    %v1487 = vmul.f32 %v1475, 1.442695
    %v1488 = vpow.pop %v1487
    %v1489 = vmul.f32 %v1476, 1.442695
    %v1490 = vpow.pop %v1489
    %v1491 = vmul.f32 %v1477, 1.442695
    %v1492 = vpow.pop %v1491
    %v1493 = vmul.f32 %v1478, 1.442695
    %v1494 = vpow.pop %v1493
    %v1495 = vadd.f32 %v1480, 1.0
    %v1496 = vadd.f32 %v1482, 1.0
    %v1497 = vadd.f32 %v1484, 1.0
    %v1498 = vadd.f32 %v1486, 1.0
    %v1499 = vadd.f32 %v1488, 1.0
    %v1500 = vadd.f32 %v1490, 1.0
    %v1501 = vadd.f32 %v1492, 1.0
    %v1502 = vadd.f32 %v1494, 1.0
    %v1503 = vrcp.pop %v1495
    %v1504 = vrcp.pop %v1496
    %v1505 = vrcp.pop %v1497
    %v1506 = vrcp.pop %v1498
    %v1507 = vrcp.pop %v1499
    %v1508 = vrcp.pop %v1500
    %v1509 = vrcp.pop %v1501
    %v1510 = vrcp.pop %v1502
    %1511 = vst [vmem:[#allocation8] sm:$0xff] %v1503
    %1512 = vst [vmem:[#allocation8 + $0x8] sm:$0xff] %v1504
    %1513 = vst [vmem:[#allocation8 + $0x10] sm:$0xff] %v1505
    %1514 = vst [vmem:[#allocation8 + $0x18] sm:$0xff] %v1506
    %1515 = vst [vmem:[#allocation8 + $0x20] sm:$0xff] %v1507
    %1516 = vst [vmem:[#allocation8 + $0x28] sm:$0xff] %v1508
    %1517 = vst [vmem:[#allocation8 + $0x30] sm:$0xff] %v1509
    %1518 = vst [vmem:[#allocation8 + $0x38] sm:$0xff] %v1510
    // Predicated region
    $region34: #{tpu_custom_call.1} parent=1 // pred_check
      _
    $region35: #{tpu_custom_call.1} parent=1 // pred_check_branch
      %1520 = sbr.rel (0) target = $region37
    $region36: #{tpu_custom_call.1} parent=1 // pred_region
      %s1522 = ssub.s32 1024, 1024
      %1523 = vsyncadd [#allocation4], %s1522
      %s1524 = sshll.u32 [#allocation8], 4
      %s1525 = int_to_ptr.vmem [resolvable:$true] %s1524
      %1530 = dma.vmem_to_hbm [thread:$0]  %s1525, 1024, %s5, [#allocation4], 128, 128, 8
    $region37: #{tpu_custom_call.1} parent=1 // pred_fallthru
      _
    // Predicated region
    $region38: #{tpu_custom_call.1} parent=1 // pred_check
      _
    $region39: #{tpu_custom_call.1} parent=1 // pred_check_branch
      %1532 = sbr.rel (0) target = $region41
    $region40: #{tpu_custom_call.1} parent=1 // pred_region
      %1533 = dma.done [#allocation4], 1024
    $region41: #{tpu_custom_call.1} parent=1 // pred_fallthru
      _
    %1534 = vsyncpa [#allocation3], 1
    %1535 = vsyncpa [#allocation6], 1
    %1536 = vsyncpa [#allocation4], 1

</llo_original>
